<compile_context>
chip_gen: v6e
topology: v6e:2x2x1
jax: 0.10.0
libtpu: 0.0.40
codegen_flags: <defaults>
</compile_context>

<pallas_src>
import functools

import jax
import jax.numpy as jnp
from jax.experimental import pallas as pl
from jax.experimental.pallas import tpu as pltpu


def _round_up(n, m):
    return ((n + m - 1) // m) * m


def _linreg_kernel(x_ref, w_ref, b_ref, o_ref):
    # (1, D) contracted with (TB, D) over D  ->  (1, TB), f32 accumulation on the MXU.
    acc = jax.lax.dot_general(
        w_ref[...], x_ref[...],
        dimension_numbers=(((1,), (1,)), ((), ())),
        preferred_element_type=jnp.float32,
    )
    # Bias is a scalar in SMEM: one scalar read, broadcast by the VPU add.
    o_ref[...] = (acc + b_ref[0, 0]).astype(o_ref.dtype)


def _chip_config():
    """Trace-time chip detection -> (is_v7x, tb_target, vmem_cap_bytes)."""
    kind = ""
    try:
        kind = jax.devices()[0].device_kind.lower()
    except Exception:
        pass
    if "v7" in kind:
        return True, 32768, 48 << 20    # 64 MiB physical per TC -> leave headroom
    if "v6" in kind:
        return False, 32768, 96 << 20   # 128 MiB physical
    if "v5" in kind:
        return False, 16384, 64 << 20   # 128 MiB physical, small default scoped limit
    return False, 16384, 48 << 20       # unknown generation: conservative, safe everywhere


@functools.partial(jax.jit, static_argnames=("tb_override",))
def linreg_forward(x, w, b, *, tb_override=None):
    """x: (B, D) f32, w: (1, D) f32 (nn.Linear weight layout), b: (1, 1) f32 -> (B, 1)."""
    B, D = x.shape
    is_v7, tb_target, vmem_cap = _chip_config()

    # Real per-row VMEM cost of one grid step: double-buffered x tile with the last
    # dim lane-padded 32->128, plus the double-buffered (1, TB) output block whose
    # sublane dim pads 1->8.  (Weight tile + SMEM bias are a few KiB, added below.)
    d_pad = _round_up(D, 128)
    bytes_per_row = 2 * d_pad * 4 + 2 * 8 * 4
    tb_cap = max(128, ((int(vmem_cap * 0.75) // bytes_per_row) // 128) * 128)

    TB = min(tb_target, tb_cap)
    TB = min(TB, _round_up(B, 128))            # don't allocate a tile far beyond B
    if B > TB:
        # Keep enough grid steps for double-buffering (and both v7x cores) to bite.
        min_steps = 8 if is_v7 else 4
        TB = min(TB, max(512, _round_up(pl.cdiv(B, min_steps), 128)))
    TB = max(TB, 128)
    if tb_override is not None:                # test hook: force a multi-step grid
        TB = max(128, _round_up(min(int(tb_override), _round_up(B, 128)), 128))

    steps = pl.cdiv(B, TB)
    # Output array rounded up to full blocks: every store is a full-lane, unmasked
    # vst; the ragged tail only exists on the *input* side (masked by the pipeline).
    B_out = steps * TB

    # Request only the VMEM this call needs (plus margin), never above the chip cap.
    needed = 2 * TB * d_pad * 4 + 2 * 8 * TB * 4 + 8 * d_pad * 4 + (2 << 20)
    vmem_limit = min(vmem_cap, max(needed, 32 << 20))

    if is_v7 and steps >= 2:
        # Only CORE_PARALLEL actually shards the grid across v7x's 2 TensorCores.
        dim_sem = (pltpu.CORE_PARALLEL,)
    else:
        dim_sem = ("parallel",)

    out_row = pl.pallas_call(
        _linreg_kernel,
        out_shape=jax.ShapeDtypeStruct((1, B_out), x.dtype),
        grid_spec=pltpu.PrefetchScalarGridSpec(
            num_scalar_prefetch=0,
            grid=(steps,),
            in_specs=[
                # x streams tile-by-tile (double-buffered); ragged last block is
                # masked by the pipeline -- its garbage lanes are sliced off below.
                pl.BlockSpec((TB, D), lambda i: (i, 0)),
                # Weight row stays resident in VMEM across all grid steps.
                pl.BlockSpec((1, D), lambda i: (0, 0)),
                # Bias lives in SMEM as a scalar.
                pl.BlockSpec(memory_space=pltpu.MemorySpace.SMEM),
            ],
            # Lane-dense output row, one distinct full block per step.
            out_specs=pl.BlockSpec((1, TB), lambda i: (0, i)),
        ),
        compiler_params=pltpu.CompilerParams(
            dimension_semantics=dim_sem,
            vmem_limit_bytes=vmem_limit,
        ),
        cost_estimate=pl.CostEstimate(
            flops=2 * B * D,
            transcendentals=0,
            bytes_accessed=B * D * 4 + B * 4 + D * 4 + 4,
        ),
    )(x, w, b)

    # Layout plumbing only: (1, B_out) -> (B, 1); lanes >= B hold masked-tail
    # garbage and are dropped here (never reduced over).
    return out_row[0, :B].reshape(B, 1)


if __name__ == "__main__":
    key = jax.random.PRNGKey(0)
    kx, kw, kb = jax.random.split(key, 3)

    # Small shapes implied by LinReg: a batch of rows, input_dim features.
    batch, input_dim = 8, 32
    x = jax.random.normal(kx, (batch, input_dim), dtype=jnp.float32)
    w = jax.random.normal(kw, (1, input_dim), dtype=jnp.float32) * 0.1
    b = jax.random.normal(kb, (1, 1), dtype=jnp.float32) * 0.1

    out = linreg_forward(x, w, b)
    jax.block_until_ready(out)
    ref = x @ w.T + b
    assert out.shape == (batch, 1)
    assert jnp.allclose(out, ref, atol=1e-5, rtol=1e-5)

    # B not a multiple of 128: single ragged block, tail lanes sliced off.
    batch2 = 2500
    x2 = jax.random.normal(kx, (batch2, input_dim), dtype=jnp.float32)
    out2 = linreg_forward(x2, w, b)
    jax.block_until_ready(out2)
    ref2 = x2 @ w.T + b
    assert out2.shape == (batch2, 1)
    assert jnp.allclose(out2, ref2, atol=1e-5, rtol=1e-5)

    # Force a multi-step grid at small size to exercise the pipelined / ragged-tail
    # path (same code path big-B inputs take with the large auto-selected TB).
    out3 = linreg_forward(x2, w, b, tb_override=512)
    jax.block_until_ready(out3)
    assert out3.shape == (batch2, 1)
    assert jnp.allclose(out3, ref2, atol=1e-5, rtol=1e-5)

    print("KERNEL_OK")
</pallas_src>

<mosaic_0001>
module attributes {stable_mosaic.version = 11 : i64} {
  func.func @_linreg_kernel(%arg0: i32, %arg1: memref<128x32xf32, #tpu.memory_space<vmem>>, %arg2: memref<1x32xf32, #tpu.memory_space<vmem>>, %arg3: memref<1x1xf32, #tpu.memory_space<smem>>, %arg4: memref<1x128xf32, #tpu.memory_space<vmem>>) attributes {dimension_semantics = [#tpu.dimension_semantics<parallel>], iteration_bounds = array<i64: 1>, scalar_prefetch = 0 : i64, scratch_operands = 0 : i64, tpu.core_type = #tpu.core_type<tc>, window_params = [{transform_indices = @transform_0, window_bounds = array<i64: 128, 32>}, {pipeline_mode = #tpu.pipeline_mode<synchronous>, transform_indices = @transform_1, window_bounds = array<i64: 1, 32>}, {transform_indices = @transform_2, window_bounds = array<i64: 1, 1>}, {transform_indices = @transform_3, window_bounds = array<i64: 1, 128>}]} {
    %c0 = arith.constant 0 : index
    %c0_0 = arith.constant 0 : index
    %0 = vector.load %arg2[%c0, %c0_0] : memref<1x32xf32, #tpu.memory_space<vmem>>, vector<1x32xf32>
    %c0_1 = arith.constant 0 : index
    %c0_2 = arith.constant 0 : index
    %1 = vector.load %arg1[%c0_1, %c0_2] : memref<128x32xf32, #tpu.memory_space<vmem>>, vector<128x32xf32>
    %cst = arith.constant dense<0.000000e+00> : vector<1x128xf32>
    %2 = tpu.matmul %0, %1, %cst {dimension_numbers = #tpu.dot_dimension_numbers<[1], [1], [0], [0], [0, 0, 1, 0], [], []>} : vector<1x32xf32>, vector<128x32xf32>, vector<1x128xf32> -> vector<1x128xf32>
    %c0_3 = arith.constant 0 : index
    %c0_4 = arith.constant 0 : index
    %3 = memref.load %arg3[%c0_3, %c0_4] : memref<1x1xf32, #tpu.memory_space<smem>>
    %4 = vector.broadcast %3 : f32 to vector<1x128xf32>
    %5 = arith.addf %2, %4 : vector<1x128xf32>
    %c0_5 = arith.constant 0 : index
    %c0_6 = arith.constant 0 : index
    %6 = vector.load %arg4[%c0_5, %c0_6] : memref<1x128xf32, #tpu.memory_space<vmem>>, vector<1x128xf32>
    tpu.vector_store %arg4[%c0_5, %c0_6], %5 {strides = array<i32>} : memref<1x128xf32, #tpu.memory_space<vmem>>, vector<1x128xf32>,
    return
  }
  func.func @transform_0(%arg0: i32) -> (i32, i32) {
    %c0_i32 = arith.constant 0 : i32
    %c0_i32_0 = arith.constant 0 : i32
    return %arg0, %c0_i32 : i32, i32
  }
  func.func @transform_1(%arg0: i32) -> (i32, i32) {
    %c0_i32 = arith.constant 0 : i32
    %c0_i32_0 = arith.constant 0 : i32
    %c0_i32_1 = arith.constant 0 : i32
    return %c0_i32, %c0_i32_0 : i32, i32
  }
  func.func @transform_2(%arg0: i32) -> (i32, i32) {
    %c0_i32 = arith.constant 0 : i32
    %c0_i32_0 = arith.constant 0 : i32
    %c0_i32_1 = arith.constant 0 : i32
    return %c0_i32, %c0_i32_0 : i32, i32
  }
  func.func @transform_3(%arg0: i32) -> (i32, i32) {
    %c0_i32 = arith.constant 0 : i32
    %c0_i32_0 = arith.constant 0 : i32
    return %c0_i32, %arg0 : i32, i32
  }
}

</mosaic_0001>

<llo_original>
// kernel: linreg_forward.1
$region0: #{linreg_forward.1}
  #allocation0 [shape = 'u32[]', space=smem, size = 0x4, offset = 0x4, fixed_abs, tag = 'smem constant byte address 0x4 - core index']
  #allocation1 [shape = 'u32[144,128]{1,0:T(1,128)}', space=vmem, size = 0x12000, scoped, tag = 'internal scratch']
  #allocation2 [shape = 'f32[1,1]{1,0:T(1,128)S(6)}', space=smem, size = 0x200, scoped, tag = 'scoped memory for linreg_forward.1']
  %s0 = inlined_call_operand.hbm [shape: f32[8,32], index: 0, kind: input, shape index: {}]
  %s1 = inlined_call_operand.vmem [shape: f32[1,32], index: 1, kind: input, shape index: {}]
  %s2 = inlined_call_operand.<no memory space> [shape: f32[1,1], index: 2, kind: input, shape index: {}]
  %s3 = inlined_call_operand.vmem [shape: f32[1,128], index: 3, kind: output, shape index: {}]
  %s4 = sld [smem:[#allocation0]]
  $region26: #{linreg_forward.1} parent=0
    _
  %s6 = ssub.s32 1, %s4
  %s7 = scalar_select 0, %s6, %s4
  %8 = sst [smem:[#allocation2]] %s2
  $region1: #{linreg_forward.1} parent=0
    #allocation3 [shape = 'u8[65536]{0}', space=vmem, size = 0x10000, scoped, tag = 'input window, operand 0, single buffered']
    #allocation4 [shape = 's32[1]{0}', space=sflag, size = 0x4, scoped, tag = 'scoped memory for linreg_forward.1']
    %9 = vsyncpa [#allocation4], 0
    // Predicated region
    $region2: #{linreg_forward.1} parent=1 // pred_check
      _
    $region3: #{linreg_forward.1} parent=1 // pred_check_branch
      %11 = sbr.rel (0) target = $region5
    $region4: #{linreg_forward.1} parent=1 // pred_region
      %s13 = ssub.s32 2048, 128
      %14 = vsyncadd [#allocation4], %s13
      %s15 = sshll.u32 [#allocation3], 4
      %s16 = int_to_ptr.vmem [resolvable:$true] %s15
      %21 = dma.hbm_to_vmem [thread:$0]  %s0, 128, %s16, [#allocation4], 128, 128, 8
    $region5: #{linreg_forward.1} parent=1 // pred_fallthru
      _
    // Predicated region
    $region6: #{linreg_forward.1} parent=1 // pred_check
      _
    $region7: #{linreg_forward.1} parent=1 // pred_check_branch
      %23 = sbr.rel (0) target = $region9
    $region8: #{linreg_forward.1} parent=1 // pred_region
      _
    $region9: #{linreg_forward.1} parent=1 // pred_fallthru
      _
    // Predicated region
    $region10: #{linreg_forward.1} parent=1 // pred_check
      _
    $region11: #{linreg_forward.1} parent=1 // pred_check_branch
      %25 = sbr.rel (0) target = $region13
    $region12: #{linreg_forward.1} parent=1 // pred_region
      _
    $region13: #{linreg_forward.1} parent=1 // pred_fallthru
      _
    // Predicated region
    $region14: #{linreg_forward.1} parent=1 // pred_check
      _
    $region15: #{linreg_forward.1} parent=1 // pred_check_branch
      %27 = sbr.rel (0) target = $region17
    $region16: #{linreg_forward.1} parent=1 // pred_region
      %28 = dma.done [#allocation4], 2048
    $region17: #{linreg_forward.1} parent=1 // pred_fallthru
      _
    %v29 = vld [vmem:[%s1] sm:$0x1]
    %v30 = vld [vmem:[#allocation3] sm:$0xff]
    %v31 = vld [vmem:[#allocation3 + $0x8] sm:$0xff]
    %v32 = vld [vmem:[#allocation3 + $0x10] sm:$0xff]
    %v33 = vld [vmem:[#allocation3 + $0x18] sm:$0xff]
    %v34 = vld [vmem:[#allocation3 + $0x20] sm:$0xff]
    %v35 = vld [vmem:[#allocation3 + $0x28] sm:$0xff]
    %v36 = vld [vmem:[#allocation3 + $0x30] sm:$0xff]
    %v37 = vld [vmem:[#allocation3 + $0x38] sm:$0xff]
    %v38 = vld [vmem:[#allocation3 + $0x40] sm:$0xff]
    %v39 = vld [vmem:[#allocation3 + $0x48] sm:$0xff]
    %v40 = vld [vmem:[#allocation3 + $0x50] sm:$0xff]
    %v41 = vld [vmem:[#allocation3 + $0x58] sm:$0xff]
    %v42 = vld [vmem:[#allocation3 + $0x60] sm:$0xff]
    %v43 = vld [vmem:[#allocation3 + $0x68] sm:$0xff]
    %v44 = vld [vmem:[#allocation3 + $0x70] sm:$0xff]
    %v45 = vld [vmem:[#allocation3 + $0x78] sm:$0xff]
    %s46 = sld [smem:[#allocation2]]
    %v47 = vstv %s46
    %vm48 = vcmask 261120
    %v50 = vsel %vm48, %v29, 0
    %v53 = vsel %vm48, %v30, 0
    %v56 = vsel %vm48, %v31, 0
    %v59 = vsel %vm48, %v32, 0
    %v62 = vsel %vm48, %v33, 0
    %v65 = vsel %vm48, %v34, 0
    %v68 = vsel %vm48, %v35, 0
    %v71 = vsel %vm48, %v36, 0
    %v74 = vsel %vm48, %v37, 0
    %v77 = vsel %vm48, %v38, 0
    %v80 = vsel %vm48, %v39, 0
    %v83 = vsel %vm48, %v40, 0
    %v86 = vsel %vm48, %v41, 0
    %v89 = vsel %vm48, %v42, 0
    %v92 = vsel %vm48, %v43, 0
    %v95 = vsel %vm48, %v44, 0
    %v98 = vsel %vm48, %v45, 0
    %100 = vmatprep.subr.mxu0 0.0
    %101 = vmatpush1.xpose.msra.mxu0 %v98
    %102 = vmatprep.subr.mxu0 0.0
    %103 = vmatpush1.xpose.msra.mxu0 %v95
    %104 = vmatprep.subr.mxu0 0.0
    %105 = vmatpush1.xpose.msra.mxu0 %v92
    %106 = vmatprep.subr.mxu0 0.0
    %107 = vmatpush1.xpose.msra.mxu0 %v89
    %108 = vmatprep.subr.mxu0 0.0
    %109 = vmatpush1.xpose.msra.mxu0 %v86
    %110 = vmatprep.subr.mxu0 0.0
    %111 = vmatpush1.xpose.msra.mxu0 %v83
    %112 = vmatprep.subr.mxu0 0.0
    %113 = vmatpush1.xpose.msra.mxu0 %v80
    %114 = vmatprep.subr.mxu0 0.0
    %115 = vmatpush1.xpose.msra.mxu0 %v77
    %116 = vmatprep.subr.mxu0 0.0
    %117 = vmatpush1.xpose.msra.mxu0 %v74
    %118 = vmatprep.subr.mxu0 0.0
    %119 = vmatpush1.xpose.msra.mxu0 %v71
    %120 = vmatprep.subr.mxu0 0.0
    %121 = vmatpush1.xpose.msra.mxu0 %v68
    %122 = vmatprep.subr.mxu0 0.0
    %123 = vmatpush1.xpose.msra.mxu0 %v65
    %124 = vmatprep.subr.mxu0 0.0
    %125 = vmatpush1.xpose.msra.mxu0 %v62
    %126 = vmatprep.subr.mxu0 0.0
    %127 = vmatpush1.xpose.msra.mxu0 %v59
    %128 = vmatprep.subr.mxu0 0.0
    %129 = vmatpush1.xpose.msra.mxu0 %v56
    %130 = vmatprep.subr.mxu0 0.0
    %131 = vmatpush1.xpose.msra.mxu0 %v53
    %132 = vmatprep.subr.mxu0 0.0
    %133 = vmatpush2.xpose.msra.mxu0 0.0
    %134 = vmatprep.subr.mxu0 0.0
    %135 = vmatpush2.xpose.msra.mxu0 0.0
    %136 = vmatprep.subr.mxu0 0.0
    %137 = vmatpush2.xpose.msra.mxu0 0.0
    %138 = vmatprep.subr.mxu0 0.0
    %139 = vmatpush2.xpose.msra.mxu0 0.0
    %140 = vmatprep.subr.mxu0 0.0
    %141 = vmatpush2.xpose.msra.mxu0 0.0
    %142 = vmatprep.subr.mxu0 0.0
    %143 = vmatpush2.xpose.msra.mxu0 0.0
    %144 = vmatprep.subr.mxu0 0.0
    %145 = vmatpush2.xpose.msra.mxu0 0.0
    %146 = vmatprep.subr.mxu0 0.0
    %147 = vmatpush2.xpose.msra.mxu0 0.0
    %148 = vmatprep.subr.mxu0 0.0
    %149 = vmatpush2.xpose.msra.mxu0 0.0
    %150 = vmatprep.subr.mxu0 0.0
    %151 = vmatpush2.xpose.msra.mxu0 0.0
    %152 = vmatprep.subr.mxu0 0.0
    %153 = vmatpush2.xpose.msra.mxu0 0.0
    %154 = vmatprep.subr.mxu0 0.0
    %155 = vmatpush2.xpose.msra.mxu0 0.0
    %156 = vmatprep.subr.mxu0 0.0
    %157 = vmatpush2.xpose.msra.mxu0 0.0
    %158 = vmatprep.subr.mxu0 0.0
    %159 = vmatpush2.xpose.msra.mxu0 0.0
    %160 = vmatprep.subr.mxu0 0.0
    %161 = vmatpush2.xpose.msra.mxu0 0.0
    %162 = vmatprep.subr.mxu0 0.0
    %163 = vmatpush2.xpose.msra.mxu0 0.0
    %164 = vmatprep.mubr.f32.mxu0 0.0
    %165 = vmatmul.mubr.f32.gmra.mxu0 %v50
    %v166 = vpop.f32.mrf.mxu0
    %v167 = vadd.f32 %v47, %v166
    %v168 = vpop.f32.mrf.mxu0
    %169 = vdwg.mxu0
    %170 = vst [vmem:[%s3] sm:$0x1] %v167
    // Predicated region
    $region18: #{linreg_forward.1} parent=1 // pred_check
      _
    $region19: #{linreg_forward.1} parent=1 // pred_check_branch
      %172 = sbr.rel (0) target = $region21
    $region20: #{linreg_forward.1} parent=1 // pred_region
      _
    $region21: #{linreg_forward.1} parent=1 // pred_fallthru
      _
    // Predicated region
    $region22: #{linreg_forward.1} parent=1 // pred_check
      _
    $region23: #{linreg_forward.1} parent=1 // pred_check_branch
      %174 = sbr.rel (0) target = $region25
    $region24: #{linreg_forward.1} parent=1 // pred_region
      _
    $region25: #{linreg_forward.1} parent=1 // pred_fallthru
      _
    %175 = vsyncpa [#allocation4], 1

</llo_original>
